<compile_context>
chip_gen: v7x
topology: tpu7x:2x2x1
jax: 0.10.0
libtpu: 0.0.40
codegen_flags: <defaults>
</compile_context>

<pallas_src>
import functools

import jax
import jax.numpy as jnp
from jax.experimental import pallas as pl
from jax.experimental.pallas import tpu as pltpu

_LANE = 128
_MiB = 2 ** 20


def _ceil_to(a, m):
    return ((a + m - 1) // m) * m


def _vmem_capacity_bytes():
    try:
        return int(pltpu.get_tpu_info().vmem_capacity_bytes)
    except Exception:
        return 64 * _MiB          # conservative fallback (v7x per-core)


def _vmem_estimate(TL, pad_al, Cp_in, Cp_out, K, weight_bytes, out_bytes,
                   single_buf_weights):
    """Rough resident-VMEM model for one grid step."""
    return int(
        2 * TL * Cp_in * 2                        # x tile, double-buffered, bf16
        + 2 * TL * Cp_out * out_bytes             # out tile, double-buffered
        + (1 if single_buf_weights else 2) * weight_bytes
        + (pad_al + TL) * (Cp_in + Cp_out) * 2    # halo staging scratch, bf16
        + TL * K * (Cp_in + Cp_out) * 2           # packed im2col lhs temporaries
        + 6 * TL * Cp_out * 4)                    # f32 matmul / relu temporaries


def _select_seq_tile(L, padding, Cp_in, Cp_out, K, weight_bytes, out_bytes,
                     requested=None):
    """Pick a sequence tile (multiple of 16, >= padding) sized per generation."""
    tl_min = _ceil_to(max(padding, 1), 16)
    if requested is not None:
        return max(tl_min, _ceil_to(requested, 16))
    pad_al = _ceil_to(padding, 16) if padding > 0 else 0
    vmem_cap = _vmem_capacity_bytes()
    # v5e/v6e (128 MiB): big tiles amortize per-step pipeline overhead.
    # v7x (64 MiB): keep tiles small so f32 temporaries + weights still fit.
    big_vmem = vmem_cap >= 100 * _MiB
    target = 2048 if big_vmem else 512
    budget = int(0.55 * (96 * _MiB if big_vmem else 40 * _MiB))
    single_buf = weight_bytes >= 2 * _MiB
    TL = max(tl_min, _ceil_to(min(target, max(L, 16)), 16))
    while TL > max(tl_min, 128) and _vmem_estimate(
            TL, pad_al, Cp_in, Cp_out, K, weight_bytes, out_bytes,
            single_buf) > budget:
        TL = max(tl_min, _ceil_to(TL // 2, 16))
    return TL


# ------------------------------- kernel body ----------------------------------
def _temporal_block_kernel(x_ref, w1_ref, b1_ref, w2_ref, b2_ref, *rest,
                           K, dilation, padding, pad_al, TL, has_downsample):
    """Grid = (batch, seq_tile).  Per step:

    x_ref : (1, TL, Cp_in)        bf16  current sequence tile (lane-padded)
    w1_ref: (K*Cp_in, Cp_out)     bf16  im2col-flattened conv1 weight
    b1_ref: (1, Cp_out)           f32
    w2_ref: (K*Cp_out, Cp_out)    bf16  im2col-flattened conv2 weight
    b2_ref: (1, Cp_out)           f32
    [wd_ref: (Cp_in, Cp_out) bf16, bd_ref: (1, Cp_out) f32]  (optional 1x1 downsample)
    out_ref: (1, TL, Cp_out)      bf16 (f32 math, cast on store)
    x_stage: VMEM (pad_al + TL, Cp_in)  bf16   causal halo staging (conv1 / residual)
    h_stage: VMEM (pad_al + TL, Cp_out) bf16   causal halo staging (conv2)
    """
    if has_downsample:
        wd_ref, bd_ref, out_ref, x_stage, h_stage = rest
    else:
        out_ref, x_stage, h_stage = rest

    t = pl.program_id(1)
    base = pad_al - padding                  # static python int >= 0
    cp_in = x_stage.shape[-1]
    cp_out = h_stage.shape[-1]

    if padding > 0:
        @pl.when(t == 0)
        def _init_halo():
            # Causal left zeros; also clears stale carry from the previous batch
            # element (scratch persists across grid steps).
            x_stage[0:pad_al, :] = jnp.zeros((pad_al, cp_in), x_stage.dtype)
            h_stage[0:pad_al, :] = jnp.zeros((pad_al, cp_out), h_stage.dtype)

    # Stage the current x tile at a sublane-aligned offset.
    x_stage[pad_al:pad_al + TL, :] = x_ref[0]

    # ---- conv1 (dilated causal): im2col pack + single MXU matmul -------------
    if K > 1:
        lhs1 = jnp.concatenate(
            [x_stage[base + j * dilation: base + j * dilation + TL, :]
             for j in range(K)], axis=-1)                  # (TL, K*Cp_in)
    else:
        lhs1 = x_stage[base:base + TL, :]
    h1 = jnp.maximum(
        jnp.dot(lhs1, w1_ref[...], preferred_element_type=jnp.float32)
        + b1_ref[...], 0.0)
    h_stage[pad_al:pad_al + TL, :] = h1.astype(h_stage.dtype)

    # ---- conv2 (dilated causal): im2col pack + single MXU matmul -------------
    if K > 1:
        lhs2 = jnp.concatenate(
            [h_stage[base + j * dilation: base + j * dilation + TL, :]
             for j in range(K)], axis=-1)                  # (TL, K*Cp_out)
    else:
        lhs2 = h_stage[base:base + TL, :]
    h2 = jnp.maximum(
        jnp.dot(lhs2, w2_ref[...], preferred_element_type=jnp.float32)
        + b2_ref[...], 0.0)

    # ---- residual + final ReLU ------------------------------------------------
    x_cur = x_stage[pad_al:pad_al + TL, :]                 # aligned start
    if has_downsample:
        res = jnp.dot(x_cur, wd_ref[...],
                      preferred_element_type=jnp.float32) + bd_ref[...]
    else:
        res = x_cur.astype(jnp.float32)                    # Cp_in == Cp_out here

    out_ref[0] = jnp.maximum(h2 + res, 0.0).astype(out_ref.dtype)

    # ---- carry the causal halo (last `padding` rows) to the next seq tile ----
    if padding > 0:
        @pl.when(t + 1 < pl.num_programs(1))
        def _carry_halo():
            x_stage[base:pad_al, :] = x_stage[pad_al + TL - padding:pad_al + TL, :]
            h_stage[base:pad_al, :] = h_stage[pad_al + TL - padding:pad_al + TL, :]


# --------------------------- kernel-layout parameters -------------------------
def _prepare_kernel_params(params, *, kernel_size, n_inputs, n_outputs):
    """Torch-layout params -> kernel layout (lane-padded, im2col-flattened, bf16)."""
    K = kernel_size
    Cp_in = _ceil_to(n_inputs, _LANE)
    Cp_out = _ceil_to(n_outputs, _LANE)
    w1 = jnp.pad(jnp.transpose(params["w1"], (2, 1, 0)),
                 ((0, 0), (0, Cp_in - n_inputs), (0, Cp_out - n_outputs)))
    w2 = jnp.pad(jnp.transpose(params["w2"], (2, 1, 0)),
                 ((0, 0), (0, Cp_out - n_outputs), (0, Cp_out - n_outputs)))
    kp = {
        # (K*Cp_in, Cp_out): row index = j*Cp_in + c, matching the packed lhs.
        "w1": w1.astype(jnp.bfloat16).reshape(K * Cp_in, Cp_out),
        "b1": jnp.pad(params["b1"], (0, Cp_out - n_outputs)
                      ).reshape(1, Cp_out).astype(jnp.float32),
        "w2": w2.astype(jnp.bfloat16).reshape(K * Cp_out, Cp_out),
        "b2": jnp.pad(params["b2"], (0, Cp_out - n_outputs)
                      ).reshape(1, Cp_out).astype(jnp.float32),
    }
    if "wd" in params:
        wd = jnp.pad(jnp.transpose(params["wd"][:, :, 0], (1, 0)),
                     ((0, Cp_in - n_inputs), (0, Cp_out - n_outputs)))
        kp["wd"] = wd.astype(jnp.bfloat16)
        kp["bd"] = jnp.pad(params["bd"], (0, Cp_out - n_outputs)
                           ).reshape(1, Cp_out).astype(jnp.float32)
    return kp


# ------------------------------ core entry point -------------------------------
def temporal_block_padded(x_p, kp, *, kernel_size, dilation, padding, seq_tile,
                          out_dtype=jnp.bfloat16):
    """Channels-last, lane-padded core.

    x_p : (N, Lp, Cp_in) bf16, Cp_in a multiple of 128, Lp a multiple of seq_tile.
    Returns (N, Lp, Cp_out) in `out_dtype`.  Stacked TemporalBlocks should chain
    through this entry point (no NCL transpose/pad/slice HBM round trips).
    """
    N, Lp, Cp_in = x_p.shape
    K = kernel_size
    TL = seq_tile
    assert TL % 16 == 0 and TL >= max(padding, 1) and Lp % TL == 0
    Cp_out = kp["w1"].shape[-1]
    has_downsample = "wd" in kp
    pad_al = _ceil_to(padding, 16) if padding > 0 else 0
    num_t = Lp // TL
    out_bytes = jnp.dtype(out_dtype).itemsize

    weight_bytes = sum(int(v.nbytes) for v in kp.values())
    # Single-buffer grid-invariant operands only when they are big enough to
    # matter (keeps the small-shape path identical to the validated one).
    single_buf = weight_bytes >= 2 * _MiB
    wkw = dict(pipeline_mode=pl.Buffered(1)) if single_buf else {}

    ins = [x_p, kp["w1"], kp["b1"], kp["w2"], kp["b2"]]
    in_specs = [
        pl.BlockSpec((1, TL, Cp_in), lambda b, t: (b, t, 0)),
        pl.BlockSpec((K * Cp_in, Cp_out), lambda b, t: (0, 0), **wkw),
        pl.BlockSpec((1, Cp_out), lambda b, t: (0, 0), **wkw),
        pl.BlockSpec((K * Cp_out, Cp_out), lambda b, t: (0, 0), **wkw),
        pl.BlockSpec((1, Cp_out), lambda b, t: (0, 0), **wkw),
    ]
    if has_downsample:
        ins += [kp["wd"], kp["bd"]]
        in_specs += [
            pl.BlockSpec((Cp_in, Cp_out), lambda b, t: (0, 0), **wkw),
            pl.BlockSpec((1, Cp_out), lambda b, t: (0, 0), **wkw),
        ]

    # Generation-aware VMEM budget: ~40 MiB cap on v7x (64 MiB), ~96 MiB on
    # v5e/v6e (128 MiB), with headroom over the estimated demand.
    vmem_cap = _vmem_capacity_bytes()
    cap = 96 * _MiB if vmem_cap >= 100 * _MiB else 40 * _MiB
    cap = min(cap, int(0.75 * vmem_cap))
    est = _vmem_estimate(TL, pad_al, Cp_in, Cp_out, K, weight_bytes, out_bytes,
                         single_buf)
    vmem_limit = int(min(cap, max(16 * _MiB, int(1.5 * est))))

    # Advisory cost so XLA schedules surrounding transpose/pad/slice sensibly.
    flops = 2 * N * Lp * K * Cp_out * (Cp_in + Cp_out)
    if has_downsample:
        flops += 2 * N * Lp * Cp_in * Cp_out
    bytes_accessed = int(x_p.nbytes) + N * Lp * Cp_out * out_bytes + weight_bytes
    cost = pl.CostEstimate(flops=flops, transcendentals=0,
                           bytes_accessed=bytes_accessed)

    kernel = functools.partial(
        _temporal_block_kernel,
        K=K, dilation=dilation, padding=padding,
        pad_al=pad_al, TL=TL, has_downsample=has_downsample,
    )

    return pl.pallas_call(
        kernel,
        out_shape=jax.ShapeDtypeStruct((N, Lp, Cp_out), out_dtype),
        grid_spec=pltpu.PrefetchScalarGridSpec(
            num_scalar_prefetch=0,
            grid=(N, num_t),                       # t innermost: halo carried per batch
            in_specs=in_specs,
            out_specs=pl.BlockSpec((1, TL, Cp_out), lambda b, t: (b, t, 0)),
            scratch_shapes=[
                pltpu.VMEM((pad_al + TL, Cp_in), jnp.bfloat16),
                pltpu.VMEM((pad_al + TL, Cp_out), jnp.bfloat16),
            ],
        ),
        compiler_params=pltpu.CompilerParams(
            dimension_semantics=("parallel", "arbitrary"),
            vmem_limit_bytes=vmem_limit,
        ),
        cost_estimate=cost,
    )(*ins)


# --------------------------- NCL (PyTorch-layout) wrapper ----------------------
def temporal_block_forward(x_ncl, params, *, kernel_size, dilation, padding,
                           seq_tile=None):
    """x_ncl: (N, C_in, L) float32 (PyTorch NCL layout). Returns (N, C_out, L) f32."""
    assert padding == dilation * (kernel_size - 1), "standard causal TCN padding"
    N, C_in, L = x_ncl.shape
    C_out = params["w1"].shape[0]
    has_downsample = "wd" in params
    if not has_downsample:
        assert C_in == C_out, "identity residual requires n_inputs == n_outputs"

    Cp_in = _ceil_to(C_in, _LANE)
    Cp_out = _ceil_to(C_out, _LANE)
    kp = _prepare_kernel_params(params, kernel_size=kernel_size,
                                n_inputs=C_in, n_outputs=C_out)
    weight_bytes = sum(int(v.nbytes) for v in kp.values())

    TL = _select_seq_tile(L, padding, Cp_in, Cp_out, kernel_size, weight_bytes,
                          out_bytes=2, requested=seq_tile)
    Lp = _ceil_to(L, TL)

    # Layout glue (paid only at model boundaries when blocks are chained via
    # temporal_block_padded): channels-last, lane/seq zero-padded, bf16.
    x_nlc = jnp.transpose(x_ncl, (0, 2, 1))
    x_p = jnp.pad(x_nlc, ((0, 0), (0, Lp - L), (0, Cp_in - C_in))
                  ).astype(jnp.bfloat16)

    out_p = temporal_block_padded(
        x_p, kp, kernel_size=kernel_size, dilation=dilation, padding=padding,
        seq_tile=TL, out_dtype=jnp.bfloat16)

    out = out_p[:, :L, :C_out].astype(jnp.float32)
    return jnp.transpose(out, (0, 2, 1))                     # (N, C_out, L)


# ----------------------------- parameter setup --------------------------------
def init_params(key, n_inputs, n_outputs, kernel_size):
    """Deterministic synthetic init mirroring the module's parameter shapes.

    weight_norm: w = g * v / ||v||_(in,k)  with g initialized to ||v||  (=> w == v).
    """
    ks = jax.random.split(key, 6)
    v1 = 0.01 * jax.random.normal(ks[0], (n_outputs, n_inputs, kernel_size), jnp.float32)
    v2 = 0.01 * jax.random.normal(ks[1], (n_outputs, n_outputs, kernel_size), jnp.float32)

    def wn(v):
        nrm = jnp.sqrt(jnp.sum(v * v, axis=(1, 2), keepdims=True))
        g = nrm
        return g * v / (nrm + 1e-12)

    params = {
        "w1": wn(v1),
        "b1": 0.05 * jax.random.normal(ks[2], (n_outputs,), jnp.float32),
        "w2": wn(v2),
        "b2": 0.05 * jax.random.normal(ks[3], (n_outputs,), jnp.float32),
    }
    if n_inputs != n_outputs:
        params["wd"] = 0.01 * jax.random.normal(ks[4], (n_outputs, n_inputs, 1), jnp.float32)
        params["bd"] = 0.05 * jax.random.normal(ks[5], (n_outputs,), jnp.float32)
    return params


# ----------------------------- pure-JAX reference -----------------------------
def reference_forward(x, params, *, kernel_size, dilation, padding):
    """Mirrors the kernel's inference precision: bf16-rounded operands, f32 math."""
    bf = lambda a: a.astype(jnp.bfloat16).astype(jnp.float32)

    def conv1d(xx, w, b):
        dn = jax.lax.conv_dimension_numbers(xx.shape, w.shape, ("NCH", "OIH", "NCH"))
        y = jax.lax.conv_general_dilated(
            xx, w, window_strides=(1,), padding=[(padding, padding)],
            rhs_dilation=(dilation,), dimension_numbers=dn,
            precision=jax.lax.Precision.HIGHEST)
        return y + b[None, :, None]

    L = x.shape[2]
    xb = bf(x)
    h = conv1d(xb, bf(params["w1"]), params["b1"])[:, :, :L]      # chomp
    h = jnp.maximum(h, 0.0)
    h = bf(h)                              # kernel stages h1 in bf16 for conv2
    h = conv1d(h, bf(params["w2"]), params["b2"])[:, :, :L]       # chomp
    h = jnp.maximum(h, 0.0)
    if "wd" in params:
        dn = jax.lax.conv_dimension_numbers(xb.shape, params["wd"].shape,
                                            ("NCH", "OIH", "NCH"))
        res = jax.lax.conv_general_dilated(
            xb, bf(params["wd"]), window_strides=(1,), padding=[(0, 0)],
            dimension_numbers=dn, precision=jax.lax.Precision.HIGHEST)
        res = res + params["bd"][None, :, None]
    else:
        res = xb
    return jnp.maximum(h + res, 0.0)


if __name__ == "__main__":
    key = jax.random.PRNGKey(0)

    def run_case(name, N, C_in, C_out, L, K, dilation, seq_tile, case_key):
        padding = (K - 1) * dilation
        kx, kpk = jax.random.split(case_key)
        x = jax.random.normal(kx, (N, C_in, L), jnp.float32)
        params = init_params(kpk, C_in, C_out, K)

        out = temporal_block_forward(x, params, kernel_size=K, dilation=dilation,
                                     padding=padding, seq_tile=seq_tile)
        out = jax.block_until_ready(out)

        ref = reference_forward(x, params, kernel_size=K, dilation=dilation,
                                padding=padding)
        assert out.shape == (N, C_out, L)
        err = jnp.max(jnp.abs(out - ref))
        # Kernel output is bf16 (f32 accumulation); tolerance sized for bf16 rounding.
        assert jnp.allclose(out, ref, atol=1.5e-2, rtol=2e-2), \
            f"{name}: max abs err {err}"

    k1, k2, k3 = jax.random.split(key, 3)
    # downsample residual path; multi-tile sequence (L=40 -> Lp=48) exercises
    # the right-pad and the cross-tile causal halo carry.
    run_case("downsample", N=2, C_in=4, C_out=8, L=40, K=3, dilation=2,
             seq_tile=16, case_key=k1)
    # identity residual path (n_inputs == n_outputs), larger dilation.
    run_case("identity", N=2, C_in=8, C_out=8, L=32, K=3, dilation=4,
             seq_tile=16, case_key=k2)
    # generation-aware auto tile selection (seq_tile=None), single-tile path.
    run_case("auto_tile", N=1, C_in=8, C_out=16, L=48, K=3, dilation=1,
             seq_tile=None, case_key=k3)

    print("KERNEL_OK")
</pallas_src>

<mosaic_0001>
module attributes {stable_mosaic.version = 11 : i64} {
  func.func @_temporal_block_kernel(%arg0: i32, %arg1: i32, %arg2: memref<1x16x128xbf16, #tpu.memory_space<vmem>>, %arg3: memref<384x128xbf16, #tpu.memory_space<vmem>>, %arg4: memref<1x128xf32, #tpu.memory_space<vmem>>, %arg5: memref<384x128xbf16, #tpu.memory_space<vmem>>, %arg6: memref<1x128xf32, #tpu.memory_space<vmem>>, %arg7: memref<128x128xbf16, #tpu.memory_space<vmem>>, %arg8: memref<1x128xf32, #tpu.memory_space<vmem>>, %arg9: memref<1x16x128xbf16, #tpu.memory_space<vmem>>, %arg10: memref<32x128xbf16, #tpu.memory_space<vmem>>, %arg11: memref<32x128xbf16, #tpu.memory_space<vmem>>) attributes {dimension_semantics = [#tpu.dimension_semantics<parallel>, #tpu.dimension_semantics<arbitrary>], iteration_bounds = array<i64: 2, 3>, scalar_prefetch = 0 : i64, scratch_operands = 2 : i64, tpu.core_type = #tpu.core_type<tc>, window_params = [{transform_indices = @transform_0, window_bounds = array<i64: 1, 16, 128>}, {pipeline_mode = #tpu.pipeline_mode<synchronous>, transform_indices = @transform_1, window_bounds = array<i64: 384, 128>}, {pipeline_mode = #tpu.pipeline_mode<synchronous>, transform_indices = @transform_2, window_bounds = array<i64: 1, 128>}, {pipeline_mode = #tpu.pipeline_mode<synchronous>, transform_indices = @transform_3, window_bounds = array<i64: 384, 128>}, {pipeline_mode = #tpu.pipeline_mode<synchronous>, transform_indices = @transform_4, window_bounds = array<i64: 1, 128>}, {pipeline_mode = #tpu.pipeline_mode<synchronous>, transform_indices = @transform_5, window_bounds = array<i64: 128, 128>}, {pipeline_mode = #tpu.pipeline_mode<synchronous>, transform_indices = @transform_6, window_bounds = array<i64: 1, 128>}, {transform_indices = @transform_7, window_bounds = array<i64: 1, 16, 128>}]} {
    %c0_i32 = arith.constant 0 : i32
    %0 = arith.cmpi eq, %arg1, %c0_i32 : i32
    %1 = arith.extui %0 : i1 to i32
    %c0_i32_0 = arith.constant 0 : i32
    %2 = arith.cmpi ne, %1, %c0_i32_0 : i32
    scf.if %2 {
      %cst_39 = arith.constant 0.000000e+00 : bf16
      %47 = vector.broadcast %cst_39 : bf16 to vector<16x128xbf16>
      %c0_40 = arith.constant 0 : index
      %c0_41 = arith.constant 0 : index
      %48 = vector.load %arg10[%c0_40, %c0_41] : memref<32x128xbf16, #tpu.memory_space<vmem>>, vector<16x128xbf16>
      tpu.vector_store %arg10[%c0_40, %c0_41], %47 {strides = array<i32>} : memref<32x128xbf16, #tpu.memory_space<vmem>>, vector<16x128xbf16>,
      %cst_42 = arith.constant 0.000000e+00 : bf16
      %49 = vector.broadcast %cst_42 : bf16 to vector<16x128xbf16>
      %c0_43 = arith.constant 0 : index
      %c0_44 = arith.constant 0 : index
      %50 = vector.load %arg11[%c0_43, %c0_44] : memref<32x128xbf16, #tpu.memory_space<vmem>>, vector<16x128xbf16>
      tpu.vector_store %arg11[%c0_43, %c0_44], %49 {strides = array<i32>} : memref<32x128xbf16, #tpu.memory_space<vmem>>, vector<16x128xbf16>,
    } else {
    }
    %c0 = arith.constant 0 : index
    %c0_1 = arith.constant 0 : index
    %c0_2 = arith.constant 0 : index
    %3 = vector.load %arg2[%c0, %c0_1, %c0_2] : memref<1x16x128xbf16, #tpu.memory_space<vmem>>, vector<1x16x128xbf16>
    %4 = vector.shape_cast %3 : vector<1x16x128xbf16> to vector<16x128xbf16>
    %c16 = arith.constant 16 : index
    %c0_3 = arith.constant 0 : index
    %5 = vector.load %arg10[%c16, %c0_3] : memref<32x128xbf16, #tpu.memory_space<vmem>>, vector<16x128xbf16>
    tpu.vector_store %arg10[%c16, %c0_3], %4 {strides = array<i32>} : memref<32x128xbf16, #tpu.memory_space<vmem>>, vector<16x128xbf16>,
    %c12 = arith.constant 12 : index
    %c0_4 = arith.constant 0 : index
    %6 = vector.load %arg10[%c12, %c0_4] : memref<32x128xbf16, #tpu.memory_space<vmem>>, vector<16x128xbf16>
    %c14 = arith.constant 14 : index
    %c0_5 = arith.constant 0 : index
    %7 = vector.load %arg10[%c14, %c0_5] : memref<32x128xbf16, #tpu.memory_space<vmem>>, vector<16x128xbf16>
    %c16_6 = arith.constant 16 : index
    %c0_7 = arith.constant 0 : index
    %8 = vector.load %arg10[%c16_6, %c0_7] : memref<32x128xbf16, #tpu.memory_space<vmem>>, vector<16x128xbf16>
    %9 = tpu.concatenate %6, %7, %8 in 1 : vector<16x128xbf16>, vector<16x128xbf16>, vector<16x128xbf16> -> vector<16x384xbf16>
    %c0_8 = arith.constant 0 : index
    %c0_9 = arith.constant 0 : index
    %10 = vector.load %arg3[%c0_8, %c0_9] : memref<384x128xbf16, #tpu.memory_space<vmem>>, vector<384x128xbf16>
    %cst = arith.constant dense<0.000000e+00> : vector<16x128xf32>
    %11 = tpu.matmul %9, %10, %cst {dimension_numbers = #tpu.dot_dimension_numbers<[1], [0], [0], [1], [0, 0, 1, 1], [], []>} : vector<16x384xbf16>, vector<384x128xbf16>, vector<16x128xf32> -> vector<16x128xf32>
    %c0_10 = arith.constant 0 : index
    %c0_11 = arith.constant 0 : index
    %12 = vector.load %arg4[%c0_10, %c0_11] : memref<1x128xf32, #tpu.memory_space<vmem>>, vector<1x128xf32>
    %13 = vector.broadcast %12 : vector<1x128xf32> to vector<16x128xf32>
    %14 = arith.addf %11, %13 : vector<16x128xf32>
    %cst_12 = arith.constant 0.000000e+00 : f32
    %15 = vector.broadcast %cst_12 : f32 to vector<16x128xf32>
    %16 = arith.maximumf %14, %15 : vector<16x128xf32>
    %17 = arith.truncf %16 : vector<16x128xf32> to vector<16x128xbf16>
    %c16_13 = arith.constant 16 : index
    %c0_14 = arith.constant 0 : index
    %18 = vector.load %arg11[%c16_13, %c0_14] : memref<32x128xbf16, #tpu.memory_space<vmem>>, vector<16x128xbf16>
    tpu.vector_store %arg11[%c16_13, %c0_14], %17 {strides = array<i32>} : memref<32x128xbf16, #tpu.memory_space<vmem>>, vector<16x128xbf16>,
    %c12_15 = arith.constant 12 : index
    %c0_16 = arith.constant 0 : index
    %19 = vector.load %arg11[%c12_15, %c0_16] : memref<32x128xbf16, #tpu.memory_space<vmem>>, vector<16x128xbf16>
    %c14_17 = arith.constant 14 : index
    %c0_18 = arith.constant 0 : index
    %20 = vector.load %arg11[%c14_17, %c0_18] : memref<32x128xbf16, #tpu.memory_space<vmem>>, vector<16x128xbf16>
    %c16_19 = arith.constant 16 : index
    %c0_20 = arith.constant 0 : index
    %21 = vector.load %arg11[%c16_19, %c0_20] : memref<32x128xbf16, #tpu.memory_space<vmem>>, vector<16x128xbf16>
    %22 = tpu.concatenate %19, %20, %21 in 1 : vector<16x128xbf16>, vector<16x128xbf16>, vector<16x128xbf16> -> vector<16x384xbf16>
    %c0_21 = arith.constant 0 : index
    %c0_22 = arith.constant 0 : index
    %23 = vector.load %arg5[%c0_21, %c0_22] : memref<384x128xbf16, #tpu.memory_space<vmem>>, vector<384x128xbf16>
    %cst_23 = arith.constant dense<0.000000e+00> : vector<16x128xf32>
    %24 = tpu.matmul %22, %23, %cst_23 {dimension_numbers = #tpu.dot_dimension_numbers<[1], [0], [0], [1], [0, 0, 1, 1], [], []>} : vector<16x384xbf16>, vector<384x128xbf16>, vector<16x128xf32> -> vector<16x128xf32>
    %c0_24 = arith.constant 0 : index
    %c0_25 = arith.constant 0 : index
    %25 = vector.load %arg6[%c0_24, %c0_25] : memref<1x128xf32, #tpu.memory_space<vmem>>, vector<1x128xf32>
    %26 = vector.broadcast %25 : vector<1x128xf32> to vector<16x128xf32>
    %27 = arith.addf %24, %26 : vector<16x128xf32>
    %cst_26 = arith.constant 0.000000e+00 : f32
    %28 = vector.broadcast %cst_26 : f32 to vector<16x128xf32>
    %29 = arith.maximumf %27, %28 : vector<16x128xf32>
    %c16_27 = arith.constant 16 : index
    %c0_28 = arith.constant 0 : index
    %30 = vector.load %arg10[%c16_27, %c0_28] : memref<32x128xbf16, #tpu.memory_space<vmem>>, vector<16x128xbf16>
    %c0_29 = arith.constant 0 : index
    %c0_30 = arith.constant 0 : index
    %31 = vector.load %arg7[%c0_29, %c0_30] : memref<128x128xbf16, #tpu.memory_space<vmem>>, vector<128x128xbf16>
    %cst_31 = arith.constant dense<0.000000e+00> : vector<16x128xf32>
    %32 = tpu.matmul %30, %31, %cst_31 {dimension_numbers = #tpu.dot_dimension_numbers<[1], [0], [0], [1], [0, 0, 1, 1], [], []>} : vector<16x128xbf16>, vector<128x128xbf16>, vector<16x128xf32> -> vector<16x128xf32>
    %c0_32 = arith.constant 0 : index
    %c0_33 = arith.constant 0 : index
    %33 = vector.load %arg8[%c0_32, %c0_33] : memref<1x128xf32, #tpu.memory_space<vmem>>, vector<1x128xf32>
    %34 = vector.broadcast %33 : vector<1x128xf32> to vector<16x128xf32>
    %35 = arith.addf %32, %34 : vector<16x128xf32>
    %36 = arith.addf %29, %35 : vector<16x128xf32>
    %cst_34 = arith.constant 0.000000e+00 : f32
    %37 = vector.broadcast %cst_34 : f32 to vector<16x128xf32>
    %38 = arith.maximumf %36, %37 : vector<16x128xf32>
    %39 = arith.truncf %38 : vector<16x128xf32> to vector<16x128xbf16>
    %c0_35 = arith.constant 0 : index
    %c0_36 = arith.constant 0 : index
    %c0_37 = arith.constant 0 : index
    %40 = vector.load %arg9[%c0_35, %c0_36, %c0_37] : memref<1x16x128xbf16, #tpu.memory_space<vmem>>, vector<1x16x128xbf16>
    %41 = vector.shape_cast %40 : vector<1x16x128xbf16> to vector<16x128xbf16>
    %42 = vector.shape_cast %39 : vector<16x128xbf16> to vector<1x16x128xbf16>
    tpu.vector_store %arg9[%c0_35, %c0_36, %c0_37], %42 {strides = array<i32>} : memref<1x16x128xbf16, #tpu.memory_space<vmem>>, vector<1x16x128xbf16>,
    %c1_i32 = arith.constant 1 : i32
    %43 = arith.addi %arg1, %c1_i32 : i32
    %c3_i32 = arith.constant 3 : i32
    %44 = arith.cmpi slt, %43, %c3_i32 : i32
    %45 = arith.extui %44 : i1 to i32
    %c0_i32_38 = arith.constant 0 : i32
    %46 = arith.cmpi ne, %45, %c0_i32_38 : i32
    scf.if %46 {
      %c28 = arith.constant 28 : index
      %c0_39 = arith.constant 0 : index
      %47 = vector.load %arg10[%c28, %c0_39] : memref<32x128xbf16, #tpu.memory_space<vmem>>, vector<4x128xbf16>
      %c12_40 = arith.constant 12 : index
      %c0_41 = arith.constant 0 : index
      %48 = vector.load %arg10[%c12_40, %c0_41] : memref<32x128xbf16, #tpu.memory_space<vmem>>, vector<4x128xbf16>
      tpu.vector_store %arg10[%c12_40, %c0_41], %47 {strides = array<i32>} : memref<32x128xbf16, #tpu.memory_space<vmem>>, vector<4x128xbf16>,
      %c28_42 = arith.constant 28 : index
      %c0_43 = arith.constant 0 : index
      %49 = vector.load %arg11[%c28_42, %c0_43] : memref<32x128xbf16, #tpu.memory_space<vmem>>, vector<4x128xbf16>
      %c12_44 = arith.constant 12 : index
      %c0_45 = arith.constant 0 : index
      %50 = vector.load %arg11[%c12_44, %c0_45] : memref<32x128xbf16, #tpu.memory_space<vmem>>, vector<4x128xbf16>
      tpu.vector_store %arg11[%c12_44, %c0_45], %49 {strides = array<i32>} : memref<32x128xbf16, #tpu.memory_space<vmem>>, vector<4x128xbf16>,
    } else {
    }
    return
  }
  func.func @transform_0(%arg0: i32, %arg1: i32) -> (i32, i32, i32) {
    %c0_i32 = arith.constant 0 : i32
    %c0_i32_0 = arith.constant 0 : i32
    return %arg0, %arg1, %c0_i32 : i32, i32, i32
  }
  func.func @transform_1(%arg0: i32, %arg1: i32) -> (i32, i32) {
    %c0_i32 = arith.constant 0 : i32
    %c0_i32_0 = arith.constant 0 : i32
    %c0_i32_1 = arith.constant 0 : i32
    return %c0_i32, %c0_i32_0 : i32, i32
  }
  func.func @transform_2(%arg0: i32, %arg1: i32) -> (i32, i32) {
    %c0_i32 = arith.constant 0 : i32
    %c0_i32_0 = arith.constant 0 : i32
    %c0_i32_1 = arith.constant 0 : i32
    return %c0_i32, %c0_i32_0 : i32, i32
  }
  func.func @transform_3(%arg0: i32, %arg1: i32) -> (i32, i32) {
    %c0_i32 = arith.constant 0 : i32
    %c0_i32_0 = arith.constant 0 : i32
    %c0_i32_1 = arith.constant 0 : i32
    return %c0_i32, %c0_i32_0 : i32, i32
  }
  func.func @transform_4(%arg0: i32, %arg1: i32) -> (i32, i32) {
    %c0_i32 = arith.constant 0 : i32
    %c0_i32_0 = arith.constant 0 : i32
    %c0_i32_1 = arith.constant 0 : i32
    return %c0_i32, %c0_i32_0 : i32, i32
  }
  func.func @transform_5(%arg0: i32, %arg1: i32) -> (i32, i32) {
    %c0_i32 = arith.constant 0 : i32
    %c0_i32_0 = arith.constant 0 : i32
    %c0_i32_1 = arith.constant 0 : i32
    return %c0_i32, %c0_i32_0 : i32, i32
  }
  func.func @transform_6(%arg0: i32, %arg1: i32) -> (i32, i32) {
    %c0_i32 = arith.constant 0 : i32
    %c0_i32_0 = arith.constant 0 : i32
    %c0_i32_1 = arith.constant 0 : i32
    return %c0_i32, %c0_i32_0 : i32, i32
  }
  func.func @transform_7(%arg0: i32, %arg1: i32) -> (i32, i32, i32) {
    %c0_i32 = arith.constant 0 : i32
    %c0_i32_0 = arith.constant 0 : i32
    return %arg0, %arg1, %c0_i32 : i32, i32, i32
  }
}

</mosaic_0001>

<llo_original>
// kernel: tpu_custom_call.1
$region0: #{tpu_custom_call.1}
  #allocation0 [shape = 'u32[]', space=smem, size = 0x4, offset = 0x4, fixed_abs, tag = 'smem constant byte address 0x4 - core index']
  #allocation1 [shape = 'u32[144,128]{1,0:T(1,128)}', space=vmem, size = 0x12000, scoped, tag = 'internal scratch']
  #allocation2 [shape = 'bf16[32,128]{1,0:T(16,128)(2,1)}', space=vmem, size = 0x2000, scoped, tag = 'scratch operand']
  #allocation3 [shape = 'bf16[32,128]{1,0:T(16,128)(2,1)}', space=vmem, size = 0x2000, scoped, tag = 'scratch operand']
  %s0 = inlined_call_operand.hbm [shape: bf16[2,48,128], index: 0, kind: input, shape index: {}]
  %s1 = inlined_call_operand.hbm [shape: bf16[384,128], index: 1, kind: input, shape index: {}]
  %s2 = inlined_call_operand.vmem [shape: f32[1,128], index: 2, kind: input, shape index: {}]
  %s3 = inlined_call_operand.hbm [shape: bf16[384,128], index: 3, kind: input, shape index: {}]
  %s4 = inlined_call_operand.vmem [shape: f32[1,128], index: 4, kind: input, shape index: {}]
  %s5 = inlined_call_operand.hbm [shape: bf16[128,128], index: 5, kind: input, shape index: {}]
  %s6 = inlined_call_operand.vmem [shape: f32[1,128], index: 6, kind: input, shape index: {}]
  %s7 = inlined_call_operand.hbm [shape: bf16[2,48,128], index: 7, kind: output, shape index: {}]
  %s8 = sld [smem:[#allocation0]]
  $region85: #{tpu_custom_call.1} parent=0
    _
  %s10 = ssub.s32 1, %s8
  %s11 = scalar_select 0, %s10, %s8
  $region1: #{tpu_custom_call.1} parent=0
    #allocation4 [shape = 'u8[8192]{0}', space=vmem, size = 0x2000, scoped, tag = 'input window, operand 0']
    #allocation5 [shape = 's32[2]{0}', space=sflag, size = 0x8, scoped, tag = 'scoped memory for tpu_custom_call.1']
    #allocation6 [shape = 's32[2]{0}', space=sflag, size = 0x8, scoped, tag = 'scoped memory for tpu_custom_call.1']
    #allocation7 [shape = 'u8[98304]{0}', space=vmem, size = 0x18000, scoped, tag = 'input window, operand 1, single buffered']
    #allocation8 [shape = 's32[1]{0}', space=sflag, size = 0x4, scoped, tag = 'scoped memory for tpu_custom_call.1']
    #allocation9 [shape = 'u8[98304]{0}', space=vmem, size = 0x18000, scoped, tag = 'input window, operand 3, single buffered']
    #allocation10 [shape = 'u8[32768]{0}', space=vmem, size = 0x8000, scoped, tag = 'input window, operand 5, single buffered']
    #allocation11 [shape = 's32[1]{0}', space=sflag, size = 0x4, scoped, tag = 'scoped memory for tpu_custom_call.1']
    #allocation12 [shape = 'u8[8192]{0}', space=vmem, size = 0x2000, scoped, tag = 'output window, operand 0']
    %12 = vsyncpa [#allocation5], 0
    %s13 = scalar_lea.sflag [#allocation5], 1
    %14 = vsyncpa %s13, 0
    %15 = vsyncpa [#allocation8], 0
    %16 = vsyncpa [#allocation11], 0
    %17 = vsyncpa [#allocation6], 0
    %s18 = scalar_lea.sflag [#allocation6], 1
    %19 = vsyncpa %s18, 0
    loop: start=0, step=1, limit=8
    $region2: #{tpu_custom_call.1} parent=1 // loop_pre_header
      _
    $region3: #{tpu_custom_call.1} parent=1 // loop_header
      %s21 = sphi 0, %s25
      %p22 = scmp.ge.s32.totalorder %s21, 8
      %s28 = sphi 0, %s40
      %s29 = sphi 0, %s36
      %s30 = sphi 0, %s28
      %s31 = sphi 0, %s29
      %s32 = sphi 0, %s30
      %s33 = sphi 0, %s31
      %s45 = sphi 0, %s47
      %s48 = sphi 0, %s45
      %s49 = sphi 0, %s48
      %s65 = sphi 0, %s49
      %s69 = sphi 0, %s69
      %s71 = sphi 0, %s69
      %s72 = sphi 0, %s71
      %s86 = sphi 0, %s72
      %s90 = sphi 0, %s90
      %s92 = sphi 0, %s90
      %s93 = sphi 0, %s92
      %s107 = sphi 0, %s93
      %s111 = sphi 0, %s111
      %s113 = sphi 0, %s111
      %s114 = sphi 0, %s113
      %s128 = sphi 0, %s114
      %s132 = sphi 0, %s132
      %s134 = sphi 0, %s132
      %s135 = sphi 0, %s134
      %s149 = sphi 0, %s135
      %s153 = sphi 0, %s153
      %s155 = sphi 0, %s153
      %s156 = sphi 0, %s155
      %s170 = sphi 0, %s156
      %s174 = sphi 0, %s174
      %s176 = sphi 0, %s174
      %s177 = sphi 0, %s176
      %s191 = sphi 0, %s177
      %s199 = sphi 0, %s201
      %s202 = sphi 0, %s199
      %s203 = sphi 0, %s202
      %s219 = sphi 0, %s203
    $region4: #{tpu_custom_call.1} parent=1 // loop_header_branch
      %24 = sbr.rel (%p22) target = $region8
    $region5: #{tpu_custom_call.1} parent=1 // loop_body
      %s26 = ssub.s32 %s21, 1
      %s27 = ssub.s32 %s21, 2
      %s34 = sadd.s32 1, %s29
      %p35 = scmp.ge.s32.totalorder %s34, 3
      %s36 = scalar_select %p35, 0, %s34
      %s37 = sadd.s32 1, %s28
      %s38 = scalar_select %p35, %s37, %s28
      %p39 = scmp.ge.s32.totalorder %s38, 2
      %s40 = scalar_select %p39, 0, %s38
      %s41 = ssub.s32 %s28, %s40
      %s42 = ssub.s32 %s29, %s36
      %s43 = sor.u32 %s41, %s42
      %p44 = scmp.eq.s32.totalorder %s43, 0
      %s46 = sadd.s32 %s45, 1
      %s47 = scalar_select %p44, %s45, %s46
      %p50 = pneg %p44
      %p51 = scmp.eq.s32.totalorder %s21, 5
      %p52 = por %p50, %p51
      %p53 = scmp.ne.s32.totalorder %s45, %s48
      %p54 = scmp.eq.s32.totalorder %s21, 0
      %p55 = por %p53, %p54
      %p56 = scmp.ne.s32.totalorder %s45, %s48
      %p57 = scmp.eq.s32.totalorder %s26, 5
      %p58 = por %p56, %p57
      %p59 = scmp.ne.s32.totalorder %s48, %s49
      %p60 = scmp.eq.s32.totalorder %s26, 0
      %p61 = por %p59, %p60
      %p62 = scmp.ne.s32.totalorder %s48, %s49
      %p63 = scmp.eq.s32.totalorder %s27, 5
      %p64 = por %p62, %p63
      %p66 = scmp.ne.s32.totalorder %s49, %s65
      %p67 = scmp.eq.s32.totalorder %s27, 0
      %p68 = por %p66, %p67
      %s70 = sadd.s32 %s69, 1
      %p73 = scmp.eq.s32.totalorder %s21, 5
      %p74 = scmp.ne.s32.totalorder %s69, %s71
      %p75 = scmp.eq.s32.totalorder %s21, 0
      %p76 = por %p74, %p75
      %p77 = scmp.ne.s32.totalorder %s69, %s71
      %p78 = scmp.eq.s32.totalorder %s26, 5
      %p79 = por %p77, %p78
      %p80 = scmp.ne.s32.totalorder %s71, %s72
      %p81 = scmp.eq.s32.totalorder %s26, 0
      %p82 = por %p80, %p81
      %p83 = scmp.ne.s32.totalorder %s71, %s72
      %p84 = scmp.eq.s32.totalorder %s27, 5
      %p85 = por %p83, %p84
      %p87 = scmp.ne.s32.totalorder %s72, %s86
      %p88 = scmp.eq.s32.totalorder %s27, 0
      %p89 = por %p87, %p88
      %s91 = sadd.s32 %s90, 1
      %p94 = scmp.eq.s32.totalorder %s21, 5
      %p95 = scmp.ne.s32.totalorder %s90, %s92
      %p96 = scmp.eq.s32.totalorder %s21, 0
      %p97 = por %p95, %p96
      %p98 = scmp.ne.s32.totalorder %s90, %s92
      %p99 = scmp.eq.s32.totalorder %s26, 5
      %p100 = por %p98, %p99
      %p101 = scmp.ne.s32.totalorder %s92, %s93
      %p102 = scmp.eq.s32.totalorder %s26, 0
      %p103 = por %p101, %p102
      %p104 = scmp.ne.s32.totalorder %s92, %s93
      %p105 = scmp.eq.s32.totalorder %s27, 5
      %p106 = por %p104, %p105
      %p108 = scmp.ne.s32.totalorder %s93, %s107
      %p109 = scmp.eq.s32.totalorder %s27, 0
      %p110 = por %p108, %p109
      %s112 = sadd.s32 %s111, 1
      %p115 = scmp.eq.s32.totalorder %s21, 5
      %p116 = scmp.ne.s32.totalorder %s111, %s113
      %p117 = scmp.eq.s32.totalorder %s21, 0
      %p118 = por %p116, %p117
      %p119 = scmp.ne.s32.totalorder %s111, %s113
      %p120 = scmp.eq.s32.totalorder %s26, 5
      %p121 = por %p119, %p120
      %p122 = scmp.ne.s32.totalorder %s113, %s114
      %p123 = scmp.eq.s32.totalorder %s26, 0
      %p124 = por %p122, %p123
      %p125 = scmp.ne.s32.totalorder %s113, %s114
      %p126 = scmp.eq.s32.totalorder %s27, 5
      %p127 = por %p125, %p126
      %p129 = scmp.ne.s32.totalorder %s114, %s128
      %p130 = scmp.eq.s32.totalorder %s27, 0
      %p131 = por %p129, %p130
      %s133 = sadd.s32 %s132, 1
      %p136 = scmp.eq.s32.totalorder %s21, 5
      %p137 = scmp.ne.s32.totalorder %s132, %s134
      %p138 = scmp.eq.s32.totalorder %s21, 0
      %p139 = por %p137, %p138
      %p140 = scmp.ne.s32.totalorder %s132, %s134
      %p141 = scmp.eq.s32.totalorder %s26, 5
      %p142 = por %p140, %p141
      %p143 = scmp.ne.s32.totalorder %s134, %s135
      %p144 = scmp.eq.s32.totalorder %s26, 0
      %p145 = por %p143, %p144
      %p146 = scmp.ne.s32.totalorder %s134, %s135
      %p147 = scmp.eq.s32.totalorder %s27, 5
      %p148 = por %p146, %p147
      %p150 = scmp.ne.s32.totalorder %s135, %s149
      %p151 = scmp.eq.s32.totalorder %s27, 0
      %p152 = por %p150, %p151
      %s154 = sadd.s32 %s153, 1
      %p157 = scmp.eq.s32.totalorder %s21, 5
      %p158 = scmp.ne.s32.totalorder %s153, %s155
      %p159 = scmp.eq.s32.totalorder %s21, 0
      %p160 = por %p158, %p159
      %p161 = scmp.ne.s32.totalorder %s153, %s155
      %p162 = scmp.eq.s32.totalorder %s26, 5
      %p163 = por %p161, %p162
      %p164 = scmp.ne.s32.totalorder %s155, %s156
      %p165 = scmp.eq.s32.totalorder %s26, 0
      %p166 = por %p164, %p165
      %p167 = scmp.ne.s32.totalorder %s155, %s156
      %p168 = scmp.eq.s32.totalorder %s27, 5
      %p169 = por %p167, %p168
      %p171 = scmp.ne.s32.totalorder %s156, %s170
      %p172 = scmp.eq.s32.totalorder %s27, 0
      %p173 = por %p171, %p172
      %s175 = sadd.s32 %s174, 1
      %p178 = scmp.eq.s32.totalorder %s21, 5
      %p179 = scmp.ne.s32.totalorder %s174, %s176
      %p180 = scmp.eq.s32.totalorder %s21, 0
      %p181 = por %p179, %p180
      %p182 = scmp.ne.s32.totalorder %s174, %s176
      %p183 = scmp.eq.s32.totalorder %s26, 5
      %p184 = por %p182, %p183
      %p185 = scmp.ne.s32.totalorder %s176, %s177
      %p186 = scmp.eq.s32.totalorder %s26, 0
      %p187 = por %p185, %p186
      %p188 = scmp.ne.s32.totalorder %s176, %s177
      %p189 = scmp.eq.s32.totalorder %s27, 5
      %p190 = por %p188, %p189
      %p192 = scmp.ne.s32.totalorder %s177, %s191
      %p193 = scmp.eq.s32.totalorder %s27, 0
      %p194 = por %p192, %p193
      %s195 = ssub.s32 %s28, %s40
      %s196 = ssub.s32 %s29, %s36
      %s197 = sor.u32 %s195, %s196
      %p198 = scmp.eq.s32.totalorder %s197, 0
      %s200 = sadd.s32 %s199, 1
      %s201 = scalar_select %p198, %s199, %s200
      %p204 = pneg %p198
      %p205 = scmp.eq.s32.totalorder %s21, 5
      %p206 = por %p204, %p205
      %p207 = scmp.ne.s32.totalorder %s199, %s202
      %p208 = scmp.eq.s32.totalorder %s21, 0
      %p209 = por %p207, %p208
      %p210 = scmp.ne.s32.totalorder %s199, %s202
      %p211 = scmp.eq.s32.totalorder %s26, 5
      %p212 = por %p210, %p211
      %p213 = scmp.ne.s32.totalorder %s202, %s203
      %p214 = scmp.eq.s32.totalorder %s26, 0
      %p215 = por %p213, %p214
      %p216 = scmp.ne.s32.totalorder %s202, %s203
      %p217 = scmp.eq.s32.totalorder %s27, 5
      %p218 = por %p216, %p217
      %p220 = scmp.ne.s32.totalorder %s203, %s219
      %p221 = scmp.eq.s32.totalorder %s27, 0
      %p222 = por %p220, %p221
      %p223 = scmp.le.s32.totalorder 1, %s21
      %p224 = scmp.lt.s32.totalorder %s21, 7
      %p225 = pnand %p223, %p224
      %p226 = pneg %p225
      // Predicated region
      $region9: #{tpu_custom_call.1} parent=5 // pred_check
        _
      $region10: #{tpu_custom_call.1} parent=5 // pred_check_branch
        %228 = sbr.rel (%p225) target = $region12
      $region11: #{tpu_custom_call.1} parent=5 // pred_region
        %s229 = ssub.s32 %s21, 1
        // Predicated region
        $region13: #{tpu_custom_call.1} parent=11 // pred_check
          %p230 = pneg %p82
        $region14: #{tpu_custom_call.1} parent=11 // pred_check_branch
          %232 = sbr.rel (%p230) target = $region16
        $region15: #{tpu_custom_call.1} parent=11 // pred_region
          %s234 = ssub.s32 3072, 3072
          %235 = vsyncadd [#allocation8], %s234
          %s236 = sshll.u32 [#allocation7], 4
          %s237 = int_to_ptr.vmem [resolvable:$true] %s236
          %242 = dma.hbm_to_vmem [thread:$0]  %s1, 3072, %s237, [#allocation8], 64, 64, 4
        $region16: #{tpu_custom_call.1} parent=11 // pred_fallthru
          _
        // Predicated region
        $region17: #{tpu_custom_call.1} parent=11 // pred_check
          %p243 = pneg %p103
        $region18: #{tpu_custom_call.1} parent=11 // pred_check_branch
          %245 = sbr.rel (%p243) target = $region20
        $region19: #{tpu_custom_call.1} parent=11 // pred_region
          _
        $region20: #{tpu_custom_call.1} parent=11 // pred_fallthru
          _
        // Predicated region
        $region21: #{tpu_custom_call.1} parent=11 // pred_check
          %p246 = pneg %p124
        $region22: #{tpu_custom_call.1} parent=11 // pred_check_branch
          %248 = sbr.rel (%p246) target = $region24
        $region23: #{tpu_custom_call.1} parent=11 // pred_region
          %s250 = ssub.s32 3072, 3072
          %251 = vsyncadd [#allocation8], %s250
          %s252 = sshll.u32 [#allocation9], 4
          %s253 = int_to_ptr.vmem [resolvable:$true] %s252
          %258 = dma.hbm_to_vmem [thread:$0]  %s3, 3072, %s253, [#allocation8], 64, 64, 4
        $region24: #{tpu_custom_call.1} parent=11 // pred_fallthru
          _
        // Predicated region
        $region25: #{tpu_custom_call.1} parent=11 // pred_check
          %p259 = pneg %p145
        $region26: #{tpu_custom_call.1} parent=11 // pred_check_branch
          %261 = sbr.rel (%p259) target = $region28
        $region27: #{tpu_custom_call.1} parent=11 // pred_region
          _
        $region28: #{tpu_custom_call.1} parent=11 // pred_fallthru
          _
        // Predicated region
        $region29: #{tpu_custom_call.1} parent=11 // pred_check
          %p262 = pneg %p166
        $region30: #{tpu_custom_call.1} parent=11 // pred_check_branch
          %264 = sbr.rel (%p262) target = $region32
        $region31: #{tpu_custom_call.1} parent=11 // pred_region
          %s266 = ssub.s32 1024, 1024
          %267 = vsyncadd [#allocation11], %s266
          %s268 = sshll.u32 [#allocation10], 4
          %s269 = int_to_ptr.vmem [resolvable:$true] %s268
          %274 = dma.hbm_to_vmem [thread:$0]  %s5, 1024, %s269, [#allocation11], 64, 64, 4
        $region32: #{tpu_custom_call.1} parent=11 // pred_fallthru
          _
        // Predicated region
        $region33: #{tpu_custom_call.1} parent=11 // pred_check
          %p275 = pneg %p187
        $region34: #{tpu_custom_call.1} parent=11 // pred_check_branch
          %277 = sbr.rel (%p275) target = $region36
        $region35: #{tpu_custom_call.1} parent=11 // pred_region
          _
        $region36: #{tpu_custom_call.1} parent=11 // pred_fallthru
          _
      $region12: #{tpu_custom_call.1} parent=5 // pred_fallthru
        _
      %p278 = scmp.lt.s32.totalorder %s21, 6
      // Predicated region
      $region37: #{tpu_custom_call.1} parent=5 // pred_check
        %p279 = pneg %p278
      $region38: #{tpu_custom_call.1} parent=5 // pred_check_branch
        %281 = sbr.rel (%p279) target = $region40
      $region39: #{tpu_custom_call.1} parent=5 // pred_region
        // Predicated region
        $region41: #{tpu_custom_call.1} parent=39 // pred_check
          %p282 = pneg %p55
        $region42: #{tpu_custom_call.1} parent=39 // pred_check_branch
          %284 = sbr.rel (%p282) target = $region44
        $region43: #{tpu_custom_call.1} parent=39 // pred_region
          %s285 = sand.u32 %s45, 1
          %s286 = scalar_lea.sflag [#allocation5], %s285
          %s287 = sand.u32 %s45, 1
          %s288 = smul.addr %s287, 8
          %s289 = scalar_lea.vmem [#allocation4], %s288
          %s290 = smul.u32 2, %s29
          %s292 = ssub.s32 128, 128
          %293 = vsyncadd %s286, %s292
          %s294 = smul.addr %s28, 6
          %s295 = sadd.s32 %s290, %s294
          %s296 = smul.addr %s295, 64
          %s297 = scalar_lea.hbm %s0, %s296
          %s298 = sshll.u32 %s289, 4
          %s299 = int_to_ptr.vmem [resolvable:$true] %s298
          %304 = dma.hbm_to_vmem [thread:$0]  %s297, 128, %s299, %s286, 64, 64, 4
        $region44: #{tpu_custom_call.1} parent=39 // pred_fallthru
          _
      $region40: #{tpu_custom_call.1} parent=5 // pred_fallthru
        _
      %p305 = scmp.le.s32.totalorder 1, %s21
      %p306 = scmp.lt.s32.totalorder %s21, 7
      %p307 = pnand %p305, %p306
      %p308 = pneg %p307
      // Predicated region
      $region45: #{tpu_custom_call.1} parent=5 // pred_check
        _
      $region46: #{tpu_custom_call.1} parent=5 // pred_check_branch
        %310 = sbr.rel (%p307) target = $region48
      $region47: #{tpu_custom_call.1} parent=5 // pred_region
        %s311 = ssub.s32 %s21, 1
        %s312 = sand.u32 %s48, 1
        %s313 = scalar_lea.sflag [#allocation5], %s312
        %s314 = sand.u32 %s48, 1
        %s315 = smul.addr %s314, 8
        %s316 = scalar_lea.vmem [#allocation4], %s315
        // Predicated region
        $region49: #{tpu_custom_call.1} parent=47 // pred_check
          %p317 = pneg %p61
        $region50: #{tpu_custom_call.1} parent=47 // pred_check_branch
          %319 = sbr.rel (%p317) target = $region52
        $region51: #{tpu_custom_call.1} parent=47 // pred_region
          %320 = dma.done %s313, 128
        $region52: #{tpu_custom_call.1} parent=47 // pred_fallthru
          _
        // Predicated region
        $region53: #{tpu_custom_call.1} parent=47 // pred_check
          %p321 = pneg %p82
        $region54: #{tpu_custom_call.1} parent=47 // pred_check_branch
          %323 = sbr.rel (%p321) target = $region56
        $region55: #{tpu_custom_call.1} parent=47 // pred_region
          %324 = dma.done [#allocation8], 3072
        $region56: #{tpu_custom_call.1} parent=47 // pred_fallthru
          _
        // Predicated region
        $region57: #{tpu_custom_call.1} parent=47 // pred_check
          %p325 = pneg %p124
        $region58: #{tpu_custom_call.1} parent=47 // pred_check_branch
          %327 = sbr.rel (%p325) target = $region60
        $region59: #{tpu_custom_call.1} parent=47 // pred_region
          %328 = dma.done [#allocation8], 3072
        $region60: #{tpu_custom_call.1} parent=47 // pred_fallthru
          _
        // Predicated region
        $region61: #{tpu_custom_call.1} parent=47 // pred_check
          %p329 = pneg %p166
        $region62: #{tpu_custom_call.1} parent=47 // pred_check_branch
          %331 = sbr.rel (%p329) target = $region64
        $region63: #{tpu_custom_call.1} parent=47 // pred_region
          %332 = dma.done [#allocation11], 1024
        $region64: #{tpu_custom_call.1} parent=47 // pred_fallthru
          _
        %s333 = sand.u32 %s48, 1
        %s334 = scalar_lea.sflag [#allocation5], %s333
        %s335 = sand.u32 %s48, 1
        %s336 = smul.addr %s335, 8
        %s337 = scalar_lea.vmem [#allocation4], %s336
        %p338 = pneg %p61
        %p339 = pneg %p58
        %p340 = pneg %p82
        %p341 = pneg %p79
        %p342 = pneg %p103
        %p343 = pneg %p100
        %p344 = pneg %p124
        %p345 = pneg %p121
        %p346 = pneg %p145
        %p347 = pneg %p142
        %p348 = pneg %p166
        %p349 = pneg %p163
        %p350 = pneg %p187
        %p351 = pneg %p184
        %p352 = pneg %p215
        %p353 = pneg %p212
        %s354 = sand.u32 %s202, 1
        %s355 = scalar_lea.sflag [#allocation6], %s354
        %s356 = sand.u32 %s202, 1
        %s357 = smul.addr %s356, 8
        %s358 = scalar_lea.vmem [#allocation12], %s357
        %s359 = smul.u32 2, %s31
        %s360 = smul.u32 2, %s31
        %p362 = scmp.eq.s32.totalorder %s31, 0
        // Predicated region
        $region65: #{tpu_custom_call.1} parent=47 // pred_check
          %p363 = pneg %p362
        $region66: #{tpu_custom_call.1} parent=47 // pred_check_branch
          %365 = sbr.rel (%p363) target = $region68
        $region67: #{tpu_custom_call.1} parent=47 // pred_region
          %366 = vst [vmem:[#allocation2] sm:$0xff] 0
          %367 = vst [vmem:[#allocation3] sm:$0xff] 0
        $region68: #{tpu_custom_call.1} parent=47 // pred_fallthru
          _
        %v368 = vld [vmem:[%s316] sm:$0xf]
        %v369 = vld [vmem:[%s316 + $0x4] sm:$0xf]
        %v372 = vunpack.c.l.b16 %v368
        %v373 = vunpack.c.l.b16 %v369
        %v374 = vpack.c.b16 %v373, %v372
        %376 = vst [vmem:[#allocation2 + $0x8] sm:$0xff] %v374
        %v377 = vld [vmem:[#allocation2] sm:$0xc0]
        %v378 = vld [vmem:[#allocation2 + $0x8] sm:$0x3f]
        %v379 = vld [vmem:[#allocation2] sm:$0x80]
        %v380 = vld [vmem:[#allocation2 + $0x8] sm:$0x7f]
        %v381 = vld [vmem:[#allocation2 + $0x8] sm:$0xff]
        %vm384 = vcmask 1046528
        %v385 = vrot.slane %v379, 1
        %v386 = vrot.slane %v380, 1
        %v387 = vsel %vm384, %v385, %v386
        %v389 = vrot.slane %v381, 2
        %v390 = vld [vmem:[#allocation7] sm:$0xf]
        %v391 = vld [vmem:[#allocation7 + $0x4] sm:$0xf]
        %v392 = vld [vmem:[#allocation7 + $0x8] sm:$0xf]
        %v393 = vld [vmem:[#allocation7 + $0xc] sm:$0xf]
        %v394 = vld [vmem:[#allocation7 + $0x10] sm:$0xf]
        %v395 = vld [vmem:[#allocation7 + $0x14] sm:$0xf]
        %v396 = vld [vmem:[#allocation7 + $0x18] sm:$0xf]
        %v397 = vld [vmem:[#allocation7 + $0x1c] sm:$0xf]
        %v398 = vld [vmem:[#allocation7 + $0x20] sm:$0xf]
        %v399 = vld [vmem:[#allocation7 + $0x24] sm:$0xf]
        %v400 = vld [vmem:[#allocation7 + $0x28] sm:$0xf]
        %v401 = vld [vmem:[#allocation7 + $0x2c] sm:$0xf]
        %v402 = vld [vmem:[#allocation7 + $0x30] sm:$0xf]
        %v403 = vld [vmem:[#allocation7 + $0x34] sm:$0xf]
        %v404 = vld [vmem:[#allocation7 + $0x38] sm:$0xf]
        %v405 = vld [vmem:[#allocation7 + $0x3c] sm:$0xf]
        %v406 = vld [vmem:[#allocation7 + $0x40] sm:$0xf]
        %v407 = vld [vmem:[#allocation7 + $0x44] sm:$0xf]
        %v408 = vld [vmem:[#allocation7 + $0x48] sm:$0xf]
        %v409 = vld [vmem:[#allocation7 + $0x4c] sm:$0xf]
        %v410 = vld [vmem:[#allocation7 + $0x50] sm:$0xf]
        %v411 = vld [vmem:[#allocation7 + $0x54] sm:$0xf]
        %v412 = vld [vmem:[#allocation7 + $0x58] sm:$0xf]
        %v413 = vld [vmem:[#allocation7 + $0x5c] sm:$0xf]
        %v414 = vld [vmem:[#allocation7 + $0x60] sm:$0xf]
        %v415 = vld [vmem:[#allocation7 + $0x64] sm:$0xf]
        %v416 = vld [vmem:[#allocation7 + $0x68] sm:$0xf]
        %v417 = vld [vmem:[#allocation7 + $0x6c] sm:$0xf]
        %v418 = vld [vmem:[#allocation7 + $0x70] sm:$0xf]
        %v419 = vld [vmem:[#allocation7 + $0x74] sm:$0xf]
        %v420 = vld [vmem:[#allocation7 + $0x78] sm:$0xf]
        %v421 = vld [vmem:[#allocation7 + $0x7c] sm:$0xf]
        %v422 = vld [vmem:[#allocation7 + $0x80] sm:$0xf]
        %v423 = vld [vmem:[#allocation7 + $0x84] sm:$0xf]
        %v424 = vld [vmem:[#allocation7 + $0x88] sm:$0xf]
        %v425 = vld [vmem:[#allocation7 + $0x8c] sm:$0xf]
        %v426 = vld [vmem:[#allocation7 + $0x90] sm:$0xf]
        %v427 = vld [vmem:[#allocation7 + $0x94] sm:$0xf]
        %v428 = vld [vmem:[#allocation7 + $0x98] sm:$0xf]
        %v429 = vld [vmem:[#allocation7 + $0x9c] sm:$0xf]
        %v430 = vld [vmem:[#allocation7 + $0xa0] sm:$0xf]
        %v431 = vld [vmem:[#allocation7 + $0xa4] sm:$0xf]
        %v432 = vld [vmem:[#allocation7 + $0xa8] sm:$0xf]
        %v433 = vld [vmem:[#allocation7 + $0xac] sm:$0xf]
        %v434 = vld [vmem:[#allocation7 + $0xb0] sm:$0xf]
        %v435 = vld [vmem:[#allocation7 + $0xb4] sm:$0xf]
        %v436 = vld [vmem:[#allocation7 + $0xb8] sm:$0xf]
        %v437 = vld [vmem:[#allocation7 + $0xbc] sm:$0xf]
        %v438 = vld [vmem:[%s2] sm:$0x1]
        %v440 = vlaneseq
        %v441 = vshrl.u32 %v440, 7
        %v442 = vsub.s32 0, %v441
        %v443 = vrot.slane %v438, %v442
        %vm447 = vcmask 1041408
        %v448 = vrot.slane %v377, 6
        %v449 = vrot.slane %v378, 6
        %v450 = vsel %vm447, %v448, %v449
        %v451 = vrot.slane %v387, 6
        %v452 = vrot.slane %v386, 6
        %v453 = vsel %vm447, %v451, %v452
        %v454 = vrot.slane %v389, 6
        %v455 = vsel %vm447, %v454, %v454
        %v507 = vunpack.c.l.b16 %v390
        %v508 = vunpack.c.l.b16 %v391
        %v509 = vunpack.c.l.b16 %v392
        %v510 = vunpack.c.l.b16 %v393
        %v511 = vunpack.c.l.b16 %v394
        %v512 = vunpack.c.l.b16 %v395
        %v513 = vunpack.c.l.b16 %v396
        %v514 = vunpack.c.l.b16 %v397
        %v515 = vunpack.c.l.b16 %v398
        %v516 = vunpack.c.l.b16 %v399
        %v517 = vunpack.c.l.b16 %v400
        %v518 = vunpack.c.l.b16 %v401
        %v519 = vunpack.c.l.b16 %v402
        %v520 = vunpack.c.l.b16 %v403
        %v521 = vunpack.c.l.b16 %v404
        %v522 = vunpack.c.l.b16 %v405
        %v523 = vunpack.c.l.b16 %v406
        %v524 = vunpack.c.l.b16 %v407
        %v525 = vunpack.c.l.b16 %v408
        %v526 = vunpack.c.l.b16 %v409
        %v527 = vunpack.c.l.b16 %v410
        %v528 = vunpack.c.l.b16 %v411
        %v529 = vunpack.c.l.b16 %v412
        %v530 = vunpack.c.l.b16 %v413
        %v531 = vunpack.c.l.b16 %v414
        %v532 = vunpack.c.l.b16 %v415
        %v533 = vunpack.c.l.b16 %v416
        %v534 = vunpack.c.l.b16 %v417
        %v535 = vunpack.c.l.b16 %v418
        %v536 = vunpack.c.l.b16 %v419
        %v537 = vunpack.c.l.b16 %v420
        %v538 = vunpack.c.l.b16 %v421
        %v539 = vunpack.c.l.b16 %v422
        %v540 = vunpack.c.l.b16 %v423
        %v541 = vunpack.c.l.b16 %v424
        %v542 = vunpack.c.l.b16 %v425
        %v543 = vunpack.c.l.b16 %v426
        %v544 = vunpack.c.l.b16 %v427
        %v545 = vunpack.c.l.b16 %v428
        %v546 = vunpack.c.l.b16 %v429
        %v547 = vunpack.c.l.b16 %v430
        %v548 = vunpack.c.l.b16 %v431
        %v549 = vunpack.c.l.b16 %v432
        %v550 = vunpack.c.l.b16 %v433
        %v551 = vunpack.c.l.b16 %v434
        %v552 = vunpack.c.l.b16 %v435
        %v553 = vunpack.c.l.b16 %v436
        %v554 = vunpack.c.l.b16 %v437
        %v555 = vpack.c.b16 %v508, %v507
        %v556 = vpack.c.b16 %v510, %v509
        %v557 = vpack.c.b16 %v512, %v511
        %v558 = vpack.c.b16 %v514, %v513
        %v559 = vpack.c.b16 %v516, %v515
        %v560 = vpack.c.b16 %v518, %v517
        %v561 = vpack.c.b16 %v520, %v519
        %v562 = vpack.c.b16 %v522, %v521
        %v563 = vpack.c.b16 %v524, %v523
        %v564 = vpack.c.b16 %v526, %v525
        %v565 = vpack.c.b16 %v528, %v527
        %v566 = vpack.c.b16 %v530, %v529
        %v567 = vpack.c.b16 %v532, %v531
        %v568 = vpack.c.b16 %v534, %v533
        %v569 = vpack.c.b16 %v536, %v535
        %v570 = vpack.c.b16 %v538, %v537
        %v571 = vpack.c.b16 %v540, %v539
        %v572 = vpack.c.b16 %v542, %v541
        %v573 = vpack.c.b16 %v544, %v543
        %v574 = vpack.c.b16 %v546, %v545
        %v575 = vpack.c.b16 %v548, %v547
        %v576 = vpack.c.b16 %v550, %v549
        %v577 = vpack.c.b16 %v552, %v551
        %v578 = vpack.c.b16 %v554, %v553
        %603 = vmatprep.subr.bf16.mxu0 0
        %604 = vmatpush1.bf16.msra.mxu0 %v555
        %605 = vmatprep.subr.bf16.mxu0 0
        %606 = vmatpush1.bf16.msra.mxu0 %v556
        %607 = vmatprep.subr.bf16.mxu0 0
        %608 = vmatpush1.bf16.msra.mxu0 %v557
        %609 = vmatprep.subr.bf16.mxu0 0
        %610 = vmatpush1.bf16.msra.mxu0 %v558
        %611 = vmatprep.subr.bf16.mxu0 0
        %612 = vmatpush1.bf16.msra.mxu0 %v559
        %613 = vmatprep.subr.bf16.mxu0 0
        %614 = vmatpush1.bf16.msra.mxu0 %v560
        %615 = vmatprep.subr.bf16.mxu0 0
        %616 = vmatpush1.bf16.msra.mxu0 %v561
        %617 = vmatprep.subr.bf16.mxu0 0
        %618 = vmatpush1.bf16.msra.mxu0 %v562
        %619 = vmatprep.subr.bf16.mxu0 0
        %620 = vmatpush1.bf16.msra.mxu0 %v563
        %621 = vmatprep.subr.bf16.mxu0 0
        %622 = vmatpush1.bf16.msra.mxu0 %v564
        %623 = vmatprep.subr.bf16.mxu0 0
        %624 = vmatpush1.bf16.msra.mxu0 %v565
        %625 = vmatprep.subr.bf16.mxu0 0
        %626 = vmatpush1.bf16.msra.mxu0 %v566
        %627 = vmatprep.subr.bf16.mxu0 0
        %628 = vmatpush1.bf16.msra.mxu0 %v567
        %629 = vmatprep.subr.bf16.mxu0 0
        %630 = vmatpush1.bf16.msra.mxu0 %v568
        %631 = vmatprep.subr.bf16.mxu0 0
        %632 = vmatpush1.bf16.msra.mxu0 %v569
        %633 = vmatprep.subr.bf16.mxu0 0
        %634 = vmatpush1.bf16.msra.mxu0 %v570
        %635 = vmatprep.mubr.bf16.mxu0 %v453
        %636 = vmatmul.mubr.bf16.gmra.mrb[0].mxu0 %v450
        %v637 = vpop.f32.mrb[0].mxu0
        %v638 = vadd.f32 %v443, %v637
        %v639 = vpop.f32.mrb[0].mxu0
        %v640 = vpop.f32.mrb[0].mxu0
        %v641 = vadd.f32 %v443, %v640
        %v642 = vpop.f32.mrb[0].mxu0
        %643 = vdwg.mxu0
        %644 = vmatprep.subr.bf16.mxu0 0
        %645 = vmatpush1.bf16.msra.mxu0 %v571
        %646 = vmatprep.subr.bf16.mxu0 0
        %647 = vmatpush1.bf16.msra.mxu0 %v572
        %648 = vmatprep.subr.bf16.mxu0 0
        %649 = vmatpush1.bf16.msra.mxu0 %v573
        %650 = vmatprep.subr.bf16.mxu0 0
        %651 = vmatpush1.bf16.msra.mxu0 %v574
        %652 = vmatprep.subr.bf16.mxu0 0
        %653 = vmatpush1.bf16.msra.mxu0 %v575
        %654 = vmatprep.subr.bf16.mxu0 0
        %655 = vmatpush1.bf16.msra.mxu0 %v576
        %656 = vmatprep.subr.bf16.mxu0 0
        %657 = vmatpush1.bf16.msra.mxu0 %v577
        %658 = vmatprep.subr.bf16.mxu0 0
        %659 = vmatpush1.bf16.msra.mxu0 %v578
        %660 = vmatprep.subr.bf16.mxu0 0
        %661 = vmatpush1.bf16.msra.mxu0 0
        %662 = vmatprep.subr.bf16.mxu0 0
        %663 = vmatpush1.bf16.msra.mxu0 0
        %664 = vmatprep.subr.bf16.mxu0 0
        %665 = vmatpush1.bf16.msra.mxu0 0
        %666 = vmatprep.subr.bf16.mxu0 0
        %667 = vmatpush1.bf16.msra.mxu0 0
        %668 = vmatprep.subr.bf16.mxu0 0
        %669 = vmatpush1.bf16.msra.mxu0 0
        %670 = vmatprep.subr.bf16.mxu0 0
        %671 = vmatpush1.bf16.msra.mxu0 0
        %672 = vmatprep.subr.bf16.mxu0 0
        %673 = vmatpush1.bf16.msra.mxu0 0
        %674 = vmatprep.subr.bf16.mxu0 0
        %675 = vmatpush1.bf16.msra.mxu0 0
        %676 = vmatprep.mubr.bf16.mxu0 0
        %677 = vmatmul.mubr.bf16.gmra.mrb[0].mxu0 %v455
        %v678 = vpop.f32.mrb[0].mxu0
        %v679 = vadd.f32 %v638, %v678
        %v680 = vpop.f32.mrb[0].mxu0
        %v681 = vpop.f32.mrb[0].mxu0
        %v682 = vadd.f32 %v641, %v681
        %v683 = vpop.f32.mrb[0].mxu0
        %684 = vdwg.mxu0
        %v685 = vmax.f32 %v679, 0.0
        %v686 = vmax.f32 %v682, 0.0
        %v687 = vpack.c.bf16 %v686, %v685
        %688 = vst [vmem:[#allocation3 + $0x8] sm:$0xff] %v687
        %v689 = vld [vmem:[#allocation3] sm:$0xc0]
        %v690 = vld [vmem:[#allocation3 + $0x8] sm:$0x3f]
        %v691 = vld [vmem:[#allocation3] sm:$0x80]
        %v692 = vld [vmem:[#allocation3 + $0x8] sm:$0x7f]
        %v693 = vld [vmem:[#allocation3 + $0x8] sm:$0xff]
        %v696 = vrot.slane %v691, 1
        %v697 = vrot.slane %v692, 1
        %v698 = vsel %vm384, %v696, %v697
        %v700 = vrot.slane %v693, 2
        %v701 = vld [vmem:[#allocation9] sm:$0xf]
        %v702 = vld [vmem:[#allocation9 + $0x4] sm:$0xf]
        %v703 = vld [vmem:[#allocation9 + $0x8] sm:$0xf]
        %v704 = vld [vmem:[#allocation9 + $0xc] sm:$0xf]
        %v705 = vld [vmem:[#allocation9 + $0x10] sm:$0xf]
        %v706 = vld [vmem:[#allocation9 + $0x14] sm:$0xf]
        %v707 = vld [vmem:[#allocation9 + $0x18] sm:$0xf]
        %v708 = vld [vmem:[#allocation9 + $0x1c] sm:$0xf]
        %v709 = vld [vmem:[#allocation9 + $0x20] sm:$0xf]
        %v710 = vld [vmem:[#allocation9 + $0x24] sm:$0xf]
        %v711 = vld [vmem:[#allocation9 + $0x28] sm:$0xf]
        %v712 = vld [vmem:[#allocation9 + $0x2c] sm:$0xf]
        %v713 = vld [vmem:[#allocation9 + $0x30] sm:$0xf]
        %v714 = vld [vmem:[#allocation9 + $0x34] sm:$0xf]
        %v715 = vld [vmem:[#allocation9 + $0x38] sm:$0xf]
        %v716 = vld [vmem:[#allocation9 + $0x3c] sm:$0xf]
        %v717 = vld [vmem:[#allocation9 + $0x40] sm:$0xf]
        %v718 = vld [vmem:[#allocation9 + $0x44] sm:$0xf]
        %v719 = vld [vmem:[#allocation9 + $0x48] sm:$0xf]
        %v720 = vld [vmem:[#allocation9 + $0x4c] sm:$0xf]
        %v721 = vld [vmem:[#allocation9 + $0x50] sm:$0xf]
        %v722 = vld [vmem:[#allocation9 + $0x54] sm:$0xf]
        %v723 = vld [vmem:[#allocation9 + $0x58] sm:$0xf]
        %v724 = vld [vmem:[#allocation9 + $0x5c] sm:$0xf]
        %v725 = vld [vmem:[#allocation9 + $0x60] sm:$0xf]
        %v726 = vld [vmem:[#allocation9 + $0x64] sm:$0xf]
        %v727 = vld [vmem:[#allocation9 + $0x68] sm:$0xf]
        %v728 = vld [vmem:[#allocation9 + $0x6c] sm:$0xf]
        %v729 = vld [vmem:[#allocation9 + $0x70] sm:$0xf]
        %v730 = vld [vmem:[#allocation9 + $0x74] sm:$0xf]
        %v731 = vld [vmem:[#allocation9 + $0x78] sm:$0xf]
        %v732 = vld [vmem:[#allocation9 + $0x7c] sm:$0xf]
        %v733 = vld [vmem:[#allocation9 + $0x80] sm:$0xf]
        %v734 = vld [vmem:[#allocation9 + $0x84] sm:$0xf]
        %v735 = vld [vmem:[#allocation9 + $0x88] sm:$0xf]
        %v736 = vld [vmem:[#allocation9 + $0x8c] sm:$0xf]
        %v737 = vld [vmem:[#allocation9 + $0x90] sm:$0xf]
        %v738 = vld [vmem:[#allocation9 + $0x94] sm:$0xf]
        %v739 = vld [vmem:[#allocation9 + $0x98] sm:$0xf]
        %v740 = vld [vmem:[#allocation9 + $0x9c] sm:$0xf]
        %v741 = vld [vmem:[#allocation9 + $0xa0] sm:$0xf]
        %v742 = vld [vmem:[#allocation9 + $0xa4] sm:$0xf]
        %v743 = vld [vmem:[#allocation9 + $0xa8] sm:$0xf]
        %v744 = vld [vmem:[#allocation9 + $0xac] sm:$0xf]
        %v745 = vld [vmem:[#allocation9 + $0xb0] sm:$0xf]
        %v746 = vld [vmem:[#allocation9 + $0xb4] sm:$0xf]
        %v747 = vld [vmem:[#allocation9 + $0xb8] sm:$0xf]
        %v748 = vld [vmem:[#allocation9 + $0xbc] sm:$0xf]
        %v749 = vld [vmem:[%s4] sm:$0x1]
        %v751 = vlaneseq
        %v752 = vshrl.u32 %v751, 7
        %v753 = vsub.s32 0, %v752
        %v754 = vrot.slane %v749, %v753
        %v758 = vrot.slane %v689, 6
        %v759 = vrot.slane %v690, 6
        %v760 = vsel %vm447, %v758, %v759
        %v761 = vrot.slane %v698, 6
        %v762 = vrot.slane %v697, 6
        %v763 = vsel %vm447, %v761, %v762
        %v764 = vrot.slane %v700, 6
        %v765 = vsel %vm447, %v764, %v764
        %v817 = vunpack.c.l.b16 %v701
        %v818 = vunpack.c.l.b16 %v702
        %v819 = vunpack.c.l.b16 %v703
        %v820 = vunpack.c.l.b16 %v704
        %v821 = vunpack.c.l.b16 %v705
        %v822 = vunpack.c.l.b16 %v706
        %v823 = vunpack.c.l.b16 %v707
        %v824 = vunpack.c.l.b16 %v708
        %v825 = vunpack.c.l.b16 %v709
        %v826 = vunpack.c.l.b16 %v710
        %v827 = vunpack.c.l.b16 %v711
        %v828 = vunpack.c.l.b16 %v712
        %v829 = vunpack.c.l.b16 %v713
        %v830 = vunpack.c.l.b16 %v714
        %v831 = vunpack.c.l.b16 %v715
        %v832 = vunpack.c.l.b16 %v716
        %v833 = vunpack.c.l.b16 %v717
        %v834 = vunpack.c.l.b16 %v718
        %v835 = vunpack.c.l.b16 %v719
        %v836 = vunpack.c.l.b16 %v720
        %v837 = vunpack.c.l.b16 %v721
        %v838 = vunpack.c.l.b16 %v722
        %v839 = vunpack.c.l.b16 %v723
        %v840 = vunpack.c.l.b16 %v724
        %v841 = vunpack.c.l.b16 %v725
        %v842 = vunpack.c.l.b16 %v726
        %v843 = vunpack.c.l.b16 %v727
        %v844 = vunpack.c.l.b16 %v728
        %v845 = vunpack.c.l.b16 %v729
        %v846 = vunpack.c.l.b16 %v730
        %v847 = vunpack.c.l.b16 %v731
        %v848 = vunpack.c.l.b16 %v732
        %v849 = vunpack.c.l.b16 %v733
        %v850 = vunpack.c.l.b16 %v734
        %v851 = vunpack.c.l.b16 %v735
        %v852 = vunpack.c.l.b16 %v736
        %v853 = vunpack.c.l.b16 %v737
        %v854 = vunpack.c.l.b16 %v738
        %v855 = vunpack.c.l.b16 %v739
        %v856 = vunpack.c.l.b16 %v740
        %v857 = vunpack.c.l.b16 %v741
        %v858 = vunpack.c.l.b16 %v742
        %v859 = vunpack.c.l.b16 %v743
        %v860 = vunpack.c.l.b16 %v744
        %v861 = vunpack.c.l.b16 %v745
        %v862 = vunpack.c.l.b16 %v746
        %v863 = vunpack.c.l.b16 %v747
        %v864 = vunpack.c.l.b16 %v748
        %v865 = vpack.c.b16 %v818, %v817
        %v866 = vpack.c.b16 %v820, %v819
        %v867 = vpack.c.b16 %v822, %v821
        %v868 = vpack.c.b16 %v824, %v823
        %v869 = vpack.c.b16 %v826, %v825
        %v870 = vpack.c.b16 %v828, %v827
        %v871 = vpack.c.b16 %v830, %v829
        %v872 = vpack.c.b16 %v832, %v831
        %v873 = vpack.c.b16 %v834, %v833
        %v874 = vpack.c.b16 %v836, %v835
        %v875 = vpack.c.b16 %v838, %v837
        %v876 = vpack.c.b16 %v840, %v839
        %v877 = vpack.c.b16 %v842, %v841
        %v878 = vpack.c.b16 %v844, %v843
        %v879 = vpack.c.b16 %v846, %v845
        %v880 = vpack.c.b16 %v848, %v847
        %v881 = vpack.c.b16 %v850, %v849
        %v882 = vpack.c.b16 %v852, %v851
        %v883 = vpack.c.b16 %v854, %v853
        %v884 = vpack.c.b16 %v856, %v855
        %v885 = vpack.c.b16 %v858, %v857
        %v886 = vpack.c.b16 %v860, %v859
        %v887 = vpack.c.b16 %v862, %v861
        %v888 = vpack.c.b16 %v864, %v863
        %913 = vmatprep.subr.bf16.mxu0 0
        %914 = vmatpush1.bf16.msra.mxu0 %v865
        %915 = vmatprep.subr.bf16.mxu0 0
        %916 = vmatpush1.bf16.msra.mxu0 %v866
        %917 = vmatprep.subr.bf16.mxu0 0
        %918 = vmatpush1.bf16.msra.mxu0 %v867
        %919 = vmatprep.subr.bf16.mxu0 0
        %920 = vmatpush1.bf16.msra.mxu0 %v868
        %921 = vmatprep.subr.bf16.mxu0 0
        %922 = vmatpush1.bf16.msra.mxu0 %v869
        %923 = vmatprep.subr.bf16.mxu0 0
        %924 = vmatpush1.bf16.msra.mxu0 %v870
        %925 = vmatprep.subr.bf16.mxu0 0
        %926 = vmatpush1.bf16.msra.mxu0 %v871
        %927 = vmatprep.subr.bf16.mxu0 0
        %928 = vmatpush1.bf16.msra.mxu0 %v872
        %929 = vmatprep.subr.bf16.mxu0 0
        %930 = vmatpush1.bf16.msra.mxu0 %v873
        %931 = vmatprep.subr.bf16.mxu0 0
        %932 = vmatpush1.bf16.msra.mxu0 %v874
        %933 = vmatprep.subr.bf16.mxu0 0
        %934 = vmatpush1.bf16.msra.mxu0 %v875
        %935 = vmatprep.subr.bf16.mxu0 0
        %936 = vmatpush1.bf16.msra.mxu0 %v876
        %937 = vmatprep.subr.bf16.mxu0 0
        %938 = vmatpush1.bf16.msra.mxu0 %v877
        %939 = vmatprep.subr.bf16.mxu0 0
        %940 = vmatpush1.bf16.msra.mxu0 %v878
        %941 = vmatprep.subr.bf16.mxu0 0
        %942 = vmatpush1.bf16.msra.mxu0 %v879
        %943 = vmatprep.subr.bf16.mxu0 0
        %944 = vmatpush1.bf16.msra.mxu0 %v880
        %945 = vmatprep.mubr.bf16.mxu0 %v763
        %946 = vmatmul.mubr.bf16.gmra.mrb[0].mxu0 %v760
        %v947 = vpop.f32.mrb[0].mxu0
        %v948 = vadd.f32 %v754, %v947
        %v949 = vpop.f32.mrb[0].mxu0
        %v950 = vpop.f32.mrb[0].mxu0
        %v951 = vadd.f32 %v754, %v950
        %v952 = vpop.f32.mrb[0].mxu0
        %953 = vdwg.mxu0
        %954 = vmatprep.subr.bf16.mxu0 0
        %955 = vmatpush1.bf16.msra.mxu0 %v881
        %956 = vmatprep.subr.bf16.mxu0 0
        %957 = vmatpush1.bf16.msra.mxu0 %v882
        %958 = vmatprep.subr.bf16.mxu0 0
        %959 = vmatpush1.bf16.msra.mxu0 %v883
        %960 = vmatprep.subr.bf16.mxu0 0
        %961 = vmatpush1.bf16.msra.mxu0 %v884
        %962 = vmatprep.subr.bf16.mxu0 0
        %963 = vmatpush1.bf16.msra.mxu0 %v885
        %964 = vmatprep.subr.bf16.mxu0 0
        %965 = vmatpush1.bf16.msra.mxu0 %v886
        %966 = vmatprep.subr.bf16.mxu0 0
        %967 = vmatpush1.bf16.msra.mxu0 %v887
        %968 = vmatprep.subr.bf16.mxu0 0
        %969 = vmatpush1.bf16.msra.mxu0 %v888
        %970 = vmatprep.subr.bf16.mxu0 0
        %971 = vmatpush1.bf16.msra.mxu0 0
        %972 = vmatprep.subr.bf16.mxu0 0
        %973 = vmatpush1.bf16.msra.mxu0 0
        %974 = vmatprep.subr.bf16.mxu0 0
        %975 = vmatpush1.bf16.msra.mxu0 0
        %976 = vmatprep.subr.bf16.mxu0 0
        %977 = vmatpush1.bf16.msra.mxu0 0
        %978 = vmatprep.subr.bf16.mxu0 0
        %979 = vmatpush1.bf16.msra.mxu0 0
        %980 = vmatprep.subr.bf16.mxu0 0
        %981 = vmatpush1.bf16.msra.mxu0 0
        %982 = vmatprep.subr.bf16.mxu0 0
        %983 = vmatpush1.bf16.msra.mxu0 0
        %984 = vmatprep.subr.bf16.mxu0 0
        %985 = vmatpush1.bf16.msra.mxu0 0
        %986 = vmatprep.mubr.bf16.mxu0 0
        %987 = vmatmul.mubr.bf16.gmra.mrb[0].mxu0 %v765
        %v988 = vpop.f32.mrb[0].mxu0
        %v989 = vadd.f32 %v948, %v988
        %v990 = vpop.f32.mrb[0].mxu0
        %v991 = vpop.f32.mrb[0].mxu0
        %v992 = vadd.f32 %v951, %v991
        %v993 = vpop.f32.mrb[0].mxu0
        %994 = vdwg.mxu0
        %v995 = vmax.f32 %v989, 0.0
        %v996 = vmax.f32 %v992, 0.0
        %v997 = vld [vmem:[#allocation2 + $0x8] sm:$0xff]
        %v998 = vld [vmem:[#allocation10] sm:$0xf]
        %v999 = vld [vmem:[#allocation10 + $0x4] sm:$0xf]
        %v1000 = vld [vmem:[#allocation10 + $0x8] sm:$0xf]
        %v1001 = vld [vmem:[#allocation10 + $0xc] sm:$0xf]
        %v1002 = vld [vmem:[#allocation10 + $0x10] sm:$0xf]
        %v1003 = vld [vmem:[#allocation10 + $0x14] sm:$0xf]
        %v1004 = vld [vmem:[#allocation10 + $0x18] sm:$0xf]
        %v1005 = vld [vmem:[#allocation10 + $0x1c] sm:$0xf]
        %v1006 = vld [vmem:[#allocation10 + $0x20] sm:$0xf]
        %v1007 = vld [vmem:[#allocation10 + $0x24] sm:$0xf]
        %v1008 = vld [vmem:[#allocation10 + $0x28] sm:$0xf]
        %v1009 = vld [vmem:[#allocation10 + $0x2c] sm:$0xf]
        %v1010 = vld [vmem:[#allocation10 + $0x30] sm:$0xf]
        %v1011 = vld [vmem:[#allocation10 + $0x34] sm:$0xf]
        %v1012 = vld [vmem:[#allocation10 + $0x38] sm:$0xf]
        %v1013 = vld [vmem:[#allocation10 + $0x3c] sm:$0xf]
        %v1014 = vld [vmem:[%s6] sm:$0x1]
        %v1016 = vlaneseq
        %v1017 = vshrl.u32 %v1016, 7
        %v1018 = vsub.s32 0, %v1017
        %v1019 = vrot.slane %v1014, %v1018
        %v1037 = vunpack.c.l.b16 %v998
        %v1038 = vunpack.c.l.b16 %v999
        %v1039 = vunpack.c.l.b16 %v1000
        %v1040 = vunpack.c.l.b16 %v1001
        %v1041 = vunpack.c.l.b16 %v1002
        %v1042 = vunpack.c.l.b16 %v1003
        %v1043 = vunpack.c.l.b16 %v1004
        %v1044 = vunpack.c.l.b16 %v1005
        %v1045 = vunpack.c.l.b16 %v1006
        %v1046 = vunpack.c.l.b16 %v1007
        %v1047 = vunpack.c.l.b16 %v1008
        %v1048 = vunpack.c.l.b16 %v1009
        %v1049 = vunpack.c.l.b16 %v1010
        %v1050 = vunpack.c.l.b16 %v1011
        %v1051 = vunpack.c.l.b16 %v1012
        %v1052 = vunpack.c.l.b16 %v1013
        %v1053 = vpack.c.b16 %v1038, %v1037
        %v1054 = vpack.c.b16 %v1040, %v1039
        %v1055 = vpack.c.b16 %v1042, %v1041
        %v1056 = vpack.c.b16 %v1044, %v1043
        %v1057 = vpack.c.b16 %v1046, %v1045
        %v1058 = vpack.c.b16 %v1048, %v1047
        %v1059 = vpack.c.b16 %v1050, %v1049
        %v1060 = vpack.c.b16 %v1052, %v1051
        %1069 = vmatprep.subr.bf16.mxu0 0
        %1070 = vmatpush1.bf16.msra.mxu0 %v1053
        %1071 = vmatprep.subr.bf16.mxu0 0
        %1072 = vmatpush1.bf16.msra.mxu0 %v1054
        %1073 = vmatprep.subr.bf16.mxu0 0
        %1074 = vmatpush1.bf16.msra.mxu0 %v1055
        %1075 = vmatprep.subr.bf16.mxu0 0
        %1076 = vmatpush1.bf16.msra.mxu0 %v1056
        %1077 = vmatprep.subr.bf16.mxu0 0
        %1078 = vmatpush1.bf16.msra.mxu0 %v1057
        %1079 = vmatprep.subr.bf16.mxu0 0
        %1080 = vmatpush1.bf16.msra.mxu0 %v1058
        %1081 = vmatprep.subr.bf16.mxu0 0
        %1082 = vmatpush1.bf16.msra.mxu0 %v1059
        %1083 = vmatprep.subr.bf16.mxu0 0
        %1084 = vmatpush1.bf16.msra.mxu0 %v1060
        %1085 = vmatprep.subr.bf16.mxu0 0
        %1086 = vmatpush1.bf16.msra.mxu0 0
        %1087 = vmatprep.subr.bf16.mxu0 0
        %1088 = vmatpush1.bf16.msra.mxu0 0
        %1089 = vmatprep.subr.bf16.mxu0 0
        %1090 = vmatpush1.bf16.msra.mxu0 0
        %1091 = vmatprep.subr.bf16.mxu0 0
        %1092 = vmatpush1.bf16.msra.mxu0 0
        %1093 = vmatprep.subr.bf16.mxu0 0
        %1094 = vmatpush1.bf16.msra.mxu0 0
        %1095 = vmatprep.subr.bf16.mxu0 0
        %1096 = vmatpush1.bf16.msra.mxu0 0
        %1097 = vmatprep.subr.bf16.mxu0 0
        %1098 = vmatpush1.bf16.msra.mxu0 0
        %1099 = vmatprep.subr.bf16.mxu0 0
        %1100 = vmatpush1.bf16.msra.mxu0 0
        %1101 = vmatprep.mubr.bf16.mxu0 0
        %1102 = vmatmul.mubr.bf16.gmra.mrb[0].mxu0 %v997
        %v1103 = vpop.f32.mrb[0].mxu0
        %v1104 = vadd.f32 %v1019, %v1103
        %v1105 = vpop.f32.mrb[0].mxu0
        %v1106 = vpop.f32.mrb[0].mxu0
        %v1107 = vadd.f32 %v1019, %v1106
        %v1108 = vpop.f32.mrb[0].mxu0
        %1109 = vdwg.mxu0
        %v1110 = vadd.f32 %v995, %v1104
        %v1111 = vadd.f32 %v996, %v1107
        %v1112 = vmax.f32 %v1110, 0.0
        %v1113 = vmax.f32 %v1111, 0.0
        %v1114 = vpack.c.bf16 %v1113, %v1112
        %v1116 = vunpack.c.l.b16 %v1114
        %v1117 = vunpack.c.h.b16 %v1114
        %v1118 = vpack.c.b16 %v1116, %v1116
        %v1119 = vpack.c.b16 %v1117, %v1117
        %1122 = vst [vmem:[%s358] sm:$0xf] %v1118
        %1123 = vst [vmem:[%s358 + $0x4] sm:$0xf] %v1119
        %s1124 = sadd.s32 %s31, 1
        %p1125 = scmp.lt.s32.totalorder %s1124, 3
        // Predicated region
        $region69: #{tpu_custom_call.1} parent=47 // pred_check
          %p1126 = pneg %p1125
        $region70: #{tpu_custom_call.1} parent=47 // pred_check_branch
          %1128 = sbr.rel (%p1126) target = $region72
        $region71: #{tpu_custom_call.1} parent=47 // pred_region
          %v1129 = vld [vmem:[#allocation2 + $0x8] sm:$0xc0]
          %1130 = vst [vmem:[#allocation2] sm:$0xc0] %v1129
          %v1131 = vld [vmem:[#allocation3 + $0x8] sm:$0xc0]
          %1132 = vst [vmem:[#allocation3] sm:$0xc0] %v1131
        $region72: #{tpu_custom_call.1} parent=47 // pred_fallthru
          _
        %s1133 = sand.u32 %s202, 1
        %s1134 = scalar_lea.sflag [#allocation6], %s1133
        %s1135 = sand.u32 %s202, 1
        %s1136 = smul.addr %s1135, 8
        %s1137 = scalar_lea.vmem [#allocation12], %s1136
        // Predicated region
        $region73: #{tpu_custom_call.1} parent=47 // pred_check
          %p1138 = pneg %p212
        $region74: #{tpu_custom_call.1} parent=47 // pred_check_branch
          %1140 = sbr.rel (%p1138) target = $region76
        $region75: #{tpu_custom_call.1} parent=47 // pred_region
          %s1141 = smul.u32 2, %s31
          %s1143 = ssub.s32 128, 128
          %1144 = vsyncadd %s1134, %s1143
          %s1145 = smul.addr %s30, 6
          %s1146 = sadd.s32 %s1141, %s1145
          %s1147 = smul.addr %s1146, 64
          %s1148 = scalar_lea.hbm %s7, %s1147
          %s1149 = sshll.u32 %s1137, 4
          %s1150 = int_to_ptr.vmem [resolvable:$true] %s1149
          %1155 = dma.vmem_to_hbm [thread:$0]  %s1150, 128, %s1148, %s1134, 64, 64, 4
        $region76: #{tpu_custom_call.1} parent=47 // pred_fallthru
          _
      $region48: #{tpu_custom_call.1} parent=5 // pred_fallthru
        _
      %p1156 = scmp.le.s32.totalorder 2, %s21
      // Predicated region
      $region77: #{tpu_custom_call.1} parent=5 // pred_check
        %p1157 = pneg %p1156
      $region78: #{tpu_custom_call.1} parent=5 // pred_check_branch
        %1159 = sbr.rel (%p1157) target = $region80
      $region79: #{tpu_custom_call.1} parent=5 // pred_region
        %s1160 = ssub.s32 %s21, 2
        // Predicated region
        $region81: #{tpu_custom_call.1} parent=79 // pred_check
          %p1161 = pneg %p218
        $region82: #{tpu_custom_call.1} parent=79 // pred_check_branch
          %1163 = sbr.rel (%p1161) target = $region84
        $region83: #{tpu_custom_call.1} parent=79 // pred_region
          %s1164 = sand.u32 %s203, 1
          %s1165 = scalar_lea.sflag [#allocation6], %s1164
          %s1166 = sand.u32 %s203, 1
          %s1167 = smul.addr %s1166, 8
          %s1168 = scalar_lea.vmem [#allocation12], %s1167
          %1169 = dma.done %s1165, 128
        $region84: #{tpu_custom_call.1} parent=79 // pred_fallthru
          _
      $region80: #{tpu_custom_call.1} parent=5 // pred_fallthru
        _
    $region6: #{tpu_custom_call.1} parent=1 // loop_footer
      %s25 = sadd.s32 1, %s21
    $region7: #{tpu_custom_call.1} parent=1 // loop_footer_branch
      %20 = sbr.rel target = $region3
    $region8: #{tpu_custom_call.1} parent=1 // loop_exit
      _
    %1170 = vsyncpa [#allocation5], 1
    %s1171 = scalar_lea.sflag [#allocation5], 1
    %1172 = vsyncpa %s1171, 1
    %1173 = vsyncpa [#allocation8], 1
    %1174 = vsyncpa [#allocation11], 1
    %1175 = vsyncpa [#allocation6], 1
    %s1176 = scalar_lea.sflag [#allocation6], 1
    %1177 = vsyncpa %s1176, 1

</llo_original>
